<compile_context>
chip_gen: v6e
topology: v6e:2x2x1
jax: 0.10.0
libtpu: 0.0.40
codegen_flags: <defaults>
</compile_context>

<pallas_src>
import functools

import jax
import jax.numpy as jnp
from jax.experimental import pallas as pl
from jax.experimental.pallas import tpu as pltpu

EPS = 1e-6
MAX_ROW_TILE_MATMUL = 256     # M tile for MXU-shaped kernels
MAX_ROW_TILE_ELEMWISE = 512   # row tile for purely elementwise kernels


# ------------------------------ small helpers -------------------------------
def _round_up(x, m):
    return (x + m - 1) // m * m


def _row_tile(n, max_tile):
    # Biggest row tile <= max_tile that is a sublane multiple (8).
    return min(max_tile, _round_up(n, 8))


def _pad_rows(x, tm):
    n = x.shape[0]
    n_pad = _round_up(n, tm)
    if n_pad != n:
        x = jnp.pad(x, ((0, n_pad - n), (0, 0)))
    return x, n_pad


def _layernorm_f32(x, g, b):
    """LN math shared by the kernels (x already f32, shape (TM, d))."""
    d = x.shape[-1]
    mean = jnp.mean(x, axis=-1, keepdims=True)
    diff = x - mean
    var = jnp.sum(diff * diff, axis=-1, keepdims=True) / (d - 1)   # ddof=1
    inv = 1.0 / (jnp.sqrt(var) + EPS)        # one divide per row, (TM,1) column
    return g * (diff * inv) + b


# ------------------- fused LN + Linear + dropout + residual -----------------
def _fused_sublayer_kernel(*refs, p, apply_dropout):
    if apply_dropout:
        x_ref, g_ref, b_ref, w_ref, bias_ref, u_ref, o_ref = refs
    else:
        x_ref, g_ref, b_ref, w_ref, bias_ref, o_ref = refs
        u_ref = None

    x = x_ref[...].astype(jnp.float32)
    normed = _layernorm_f32(x,
                            g_ref[...].astype(jnp.float32),
                            b_ref[...].astype(jnp.float32))

    # Matmul prologue output feeds the MXU directly; bias added in f32.
    y = jnp.dot(normed.astype(w_ref.dtype), w_ref[...],
                preferred_element_type=jnp.float32)
    y = y + bias_ref[...].astype(jnp.float32)

    if apply_dropout:
        # Inverted dropout: keep with prob (1-p), scale kept values by 1/(1-p).
        scale = jnp.where(u_ref[...] >= p, 1.0 / (1.0 - p), 0.0)
        y = y * scale

    o_ref[...] = (x + y).astype(o_ref.dtype)


def fused_sublayer_linear(x2, gamma, beta, w, b, *, p=0.0, key=None):
    """Single pallas_call: x + dropout(LN(x) @ w + b).  x2: [rows, size]."""
    n, d_in = x2.shape
    d_out = w.shape[1]
    assert d_in == d_out, "residual connection requires size-preserving sublayer"

    tm = _row_tile(n, MAX_ROW_TILE_MATMUL)
    x_pad, n_pad = _pad_rows(x2, tm)

    apply_dropout = (p > 0.0) and (key is not None)

    in_arrays = [x_pad, gamma, beta, w, b]
    in_specs = [
        pl.BlockSpec((tm, d_in), lambda i: (i, 0)),
        pl.BlockSpec((1, d_in), lambda i: (0, 0)),      # gamma — VMEM resident
        pl.BlockSpec((1, d_in), lambda i: (0, 0)),      # beta  — VMEM resident
        pl.BlockSpec((d_in, d_out), lambda i: (0, 0)),  # W     — VMEM resident
        pl.BlockSpec((1, d_out), lambda i: (0, 0)),     # bias  — VMEM resident
    ]
    if apply_dropout:
        u = jax.random.uniform(key, (n_pad, d_out), jnp.float32)
        in_arrays.append(u)
        in_specs.append(pl.BlockSpec((tm, d_out), lambda i: (i, 0)))

    kernel = functools.partial(_fused_sublayer_kernel, p=float(p),
                               apply_dropout=apply_dropout)
    out = pl.pallas_call(
        kernel,
        out_shape=jax.ShapeDtypeStruct((n_pad, d_out), x2.dtype),
        grid=(n_pad // tm,),
        in_specs=in_specs,
        out_specs=pl.BlockSpec((tm, d_out), lambda i: (i, 0)),
        compiler_params=pltpu.CompilerParams(dimension_semantics=("parallel",)),
    )(*in_arrays)
    return out[:n]


# ----------------- unfused path (arbitrary sublayer callable) ---------------
def _layernorm_kernel(x_ref, g_ref, b_ref, o_ref):
    x = x_ref[...].astype(jnp.float32)
    y = _layernorm_f32(x, g_ref[...].astype(jnp.float32),
                       b_ref[...].astype(jnp.float32))
    o_ref[...] = y.astype(o_ref.dtype)


def layernorm(x2, gamma, beta):
    n, d = x2.shape
    tm = _row_tile(n, MAX_ROW_TILE_ELEMWISE)
    x_pad, n_pad = _pad_rows(x2, tm)
    out = pl.pallas_call(
        _layernorm_kernel,
        out_shape=jax.ShapeDtypeStruct((n_pad, d), x2.dtype),
        grid=(n_pad // tm,),
        in_specs=[pl.BlockSpec((tm, d), lambda i: (i, 0)),
                  pl.BlockSpec((1, d), lambda i: (0, 0)),
                  pl.BlockSpec((1, d), lambda i: (0, 0))],
        out_specs=pl.BlockSpec((tm, d), lambda i: (i, 0)),
        compiler_params=pltpu.CompilerParams(dimension_semantics=("parallel",)),
    )(x_pad, gamma, beta)
    return out[:n]


def _linear_kernel(x_ref, w_ref, b_ref, o_ref):
    acc = jnp.dot(x_ref[...].astype(w_ref.dtype), w_ref[...],
                  preferred_element_type=jnp.float32)
    o_ref[...] = (acc + b_ref[...].astype(jnp.float32)).astype(o_ref.dtype)


def linear(x2, w, b):
    n, d_in = x2.shape
    d_out = w.shape[1]
    tm = _row_tile(n, MAX_ROW_TILE_MATMUL)
    x_pad, n_pad = _pad_rows(x2, tm)
    out = pl.pallas_call(
        _linear_kernel,
        out_shape=jax.ShapeDtypeStruct((n_pad, d_out), x2.dtype),
        grid=(n_pad // tm,),
        in_specs=[pl.BlockSpec((tm, d_in), lambda i: (i, 0)),
                  pl.BlockSpec((d_in, d_out), lambda i: (0, 0)),
                  pl.BlockSpec((1, d_out), lambda i: (0, 0))],
        out_specs=pl.BlockSpec((tm, d_out), lambda i: (i, 0)),
        compiler_params=pltpu.CompilerParams(dimension_semantics=("parallel",)),
    )(x_pad, w, b)
    return out[:n]


def _residual_dropout_kernel(*refs, p, apply_dropout):
    if apply_dropout:
        x_ref, y_ref, u_ref, o_ref = refs
    else:
        x_ref, y_ref, o_ref = refs
        u_ref = None
    x = x_ref[...].astype(jnp.float32)
    y = y_ref[...].astype(jnp.float32)
    if apply_dropout:
        scale = jnp.where(u_ref[...] >= p, 1.0 / (1.0 - p), 0.0)
        y = y * scale
    o_ref[...] = (x + y).astype(o_ref.dtype)


def residual_dropout(x2, y2, *, p=0.0, key=None):
    n, d = x2.shape
    tm = _row_tile(n, MAX_ROW_TILE_ELEMWISE)
    x_pad, n_pad = _pad_rows(x2, tm)
    y_pad, _ = _pad_rows(y2, tm)

    apply_dropout = (p > 0.0) and (key is not None)
    in_arrays = [x_pad, y_pad]
    in_specs = [pl.BlockSpec((tm, d), lambda i: (i, 0)),
                pl.BlockSpec((tm, d), lambda i: (i, 0))]
    if apply_dropout:
        u = jax.random.uniform(key, (n_pad, d), jnp.float32)
        in_arrays.append(u)
        in_specs.append(pl.BlockSpec((tm, d), lambda i: (i, 0)))

    kernel = functools.partial(_residual_dropout_kernel, p=float(p),
                               apply_dropout=apply_dropout)
    out = pl.pallas_call(
        kernel,
        out_shape=jax.ShapeDtypeStruct((n_pad, d), x2.dtype),
        grid=(n_pad // tm,),
        in_specs=in_specs,
        out_specs=pl.BlockSpec((tm, d), lambda i: (i, 0)),
        compiler_params=pltpu.CompilerParams(dimension_semantics=("parallel",)),
    )(*in_arrays)
    return out[:n]


# --------------------------------- module -----------------------------------
class PallasLinear:
    """Linear(size, size) example sublayer; enables the fused path."""

    def __init__(self, w, b):
        self.w = w
        self.b = b

    def __call__(self, h):
        return linear(h, self.w, self.b)


class Sublayer:
    """x + dropout(sublayer(LayerNorm(x))) — forward only, Pallas-backed."""

    def __init__(self, size, dropout):
        self.size = size
        self.gamma = jnp.ones((1, size), jnp.float32)   # a_2
        self.beta = jnp.zeros((1, size), jnp.float32)   # b_2
        self.p = float(dropout)

    def __call__(self, x, sublayer, *, key=None, training=True):
        lead = x.shape[:-1]
        d = x.shape[-1]
        x2 = x.reshape(-1, d)
        p = self.p if (training and key is not None) else 0.0

        if isinstance(sublayer, PallasLinear) and sublayer.w.shape == (d, d):
            # Fused LN + matmul + bias + dropout + residual (single HBM pass).
            out = fused_sublayer_linear(x2, self.gamma, self.beta,
                                        sublayer.w, sublayer.b, p=p, key=key)
        else:
            # Generic path for arbitrary sublayer callables.
            normed = layernorm(x2, self.gamma, self.beta)
            y = sublayer(normed)
            out = residual_dropout(x2, y, p=p, key=key)
        return out.reshape(*lead, d)


# -------------------------------- reference ---------------------------------
def ref_forward_eval(x, gamma, beta, w, b):
    mean = x.mean(-1, keepdims=True)
    diff = x - mean
    var = (diff * diff).sum(-1, keepdims=True) / (x.shape[-1] - 1)
    std = jnp.sqrt(var)
    normed = gamma.reshape(-1) * diff / (std + EPS) + beta.reshape(-1)
    y = normed @ w + b.reshape(-1)
    return x + y


if __name__ == "__main__":
    batch, seq, size = 2, 8, 128
    key = jax.random.PRNGKey(0)
    kx, kw, kb, kd = jax.random.split(key, 4)

    x = jax.random.normal(kx, (batch, seq, size), dtype=jnp.float32)
    w = jax.random.normal(kw, (size, size), dtype=jnp.float32) * 0.02
    b = jax.random.normal(kb, (1, size), dtype=jnp.float32) * 0.02

    module = Sublayer(size, dropout=0.1)
    lin = PallasLinear(w, b)
    ref = ref_forward_eval(x, module.gamma, module.beta, w, b)

    # Eval mode, fused path: dropout is identity -> must match the reference.
    out_fused = jax.block_until_ready(module(x, lin, training=False))
    assert out_fused.shape == x.shape and out_fused.dtype == x.dtype
    assert jnp.allclose(out_fused, ref, atol=1e-4, rtol=1e-4), "fused path mismatch"

    # Eval mode, generic (unfused) path: exercises LN / linear / residual kernels.
    generic_fn = lambda h: linear(h, w, b)
    out_generic = jax.block_until_ready(module(x, generic_fn, training=False))
    assert jnp.allclose(out_generic, ref, atol=1e-4, rtol=1e-4), "generic path mismatch"

    # Training mode, fused path with dropout (mask generated via jax.random).
    out_train = jax.block_until_ready(module(x, lin, key=kd, training=True))
    assert out_train.shape == x.shape
    assert bool(jnp.all(jnp.isfinite(out_train)))

    print("KERNEL_OK")
</pallas_src>

<mosaic_0001>
module attributes {stable_mosaic.version = 11 : i64} {
  func.func @_fused_sublayer_kernel(%arg0: i32, %arg1: memref<16x128xf32, #tpu.memory_space<vmem>>, %arg2: memref<1x128xf32, #tpu.memory_space<vmem>>, %arg3: memref<1x128xf32, #tpu.memory_space<vmem>>, %arg4: memref<128x128xf32, #tpu.memory_space<vmem>>, %arg5: memref<1x128xf32, #tpu.memory_space<vmem>>, %arg6: memref<16x128xf32, #tpu.memory_space<vmem>>) attributes {dimension_semantics = [#tpu.dimension_semantics<parallel>], iteration_bounds = array<i64: 1>, scalar_prefetch = 0 : i64, scratch_operands = 0 : i64, tpu.core_type = #tpu.core_type<tc>, window_params = [{transform_indices = @transform_0, window_bounds = array<i64: 16, 128>}, {pipeline_mode = #tpu.pipeline_mode<synchronous>, transform_indices = @transform_1, window_bounds = array<i64: 1, 128>}, {pipeline_mode = #tpu.pipeline_mode<synchronous>, transform_indices = @transform_2, window_bounds = array<i64: 1, 128>}, {pipeline_mode = #tpu.pipeline_mode<synchronous>, transform_indices = @transform_3, window_bounds = array<i64: 128, 128>}, {pipeline_mode = #tpu.pipeline_mode<synchronous>, transform_indices = @transform_4, window_bounds = array<i64: 1, 128>}, {transform_indices = @transform_5, window_bounds = array<i64: 16, 128>}]} {
    %c0 = arith.constant 0 : index
    %c0_0 = arith.constant 0 : index
    %0 = vector.load %arg1[%c0, %c0_0] : memref<16x128xf32, #tpu.memory_space<vmem>>, vector<16x128xf32>
    %c0_1 = arith.constant 0 : index
    %c0_2 = arith.constant 0 : index
    %1 = vector.load %arg2[%c0_1, %c0_2] : memref<1x128xf32, #tpu.memory_space<vmem>>, vector<1x128xf32>
    %c0_3 = arith.constant 0 : index
    %c0_4 = arith.constant 0 : index
    %2 = vector.load %arg3[%c0_3, %c0_4] : memref<1x128xf32, #tpu.memory_space<vmem>>, vector<1x128xf32>
    %cst = arith.constant dense<0.000000e+00> : vector<16xf32>
    %3 = vector.multi_reduction <add>, %0, %cst [1] : vector<16x128xf32> to vector<16xf32>
    %4 = vector.shape_cast %3 : vector<16xf32> to vector<16x1xf32>
    %cst_5 = arith.constant 1.280000e+02 : f32
    %5 = vector.broadcast %cst_5 : f32 to vector<16x1xf32>
    %6 = arith.divf %4, %5 : vector<16x1xf32>
    %7 = vector.broadcast %6 : vector<16x1xf32> to vector<16x128xf32>
    %8 = arith.subf %0, %7 : vector<16x128xf32>
    %9 = arith.mulf %8, %8 : vector<16x128xf32>
    %cst_6 = arith.constant dense<0.000000e+00> : vector<16xf32>
    %10 = vector.multi_reduction <add>, %9, %cst_6 [1] : vector<16x128xf32> to vector<16xf32>
    %11 = vector.shape_cast %10 : vector<16xf32> to vector<16x1xf32>
    %cst_7 = arith.constant 1.270000e+02 : f32
    %12 = vector.broadcast %cst_7 : f32 to vector<16x1xf32>
    %13 = arith.divf %11, %12 : vector<16x1xf32>
    %14 = math.sqrt %13 : vector<16x1xf32>
    %cst_8 = arith.constant 9.99999997E-7 : f32
    %15 = vector.broadcast %cst_8 : f32 to vector<16x1xf32>
    %16 = arith.addf %14, %15 : vector<16x1xf32>
    %cst_9 = arith.constant 1.000000e+00 : f32
    %17 = vector.broadcast %cst_9 : f32 to vector<16x1xf32>
    %18 = arith.divf %17, %16 : vector<16x1xf32>
    %19 = vector.broadcast %18 : vector<16x1xf32> to vector<16x128xf32>
    %20 = arith.mulf %8, %19 : vector<16x128xf32>
    %21 = vector.broadcast %1 : vector<1x128xf32> to vector<16x128xf32>
    %22 = arith.mulf %21, %20 : vector<16x128xf32>
    %23 = vector.broadcast %2 : vector<1x128xf32> to vector<16x128xf32>
    %24 = arith.addf %22, %23 : vector<16x128xf32>
    %c0_10 = arith.constant 0 : index
    %c0_11 = arith.constant 0 : index
    %25 = vector.load %arg4[%c0_10, %c0_11] : memref<128x128xf32, #tpu.memory_space<vmem>>, vector<128x128xf32>
    %cst_12 = arith.constant dense<0.000000e+00> : vector<16x128xf32>
    %26 = tpu.matmul %24, %25, %cst_12 {dimension_numbers = #tpu.dot_dimension_numbers<[1], [0], [0], [1], [0, 0, 1, 1], [], []>} : vector<16x128xf32>, vector<128x128xf32>, vector<16x128xf32> -> vector<16x128xf32>
    %c0_13 = arith.constant 0 : index
    %c0_14 = arith.constant 0 : index
    %27 = vector.load %arg5[%c0_13, %c0_14] : memref<1x128xf32, #tpu.memory_space<vmem>>, vector<1x128xf32>
    %28 = vector.broadcast %27 : vector<1x128xf32> to vector<16x128xf32>
    %29 = arith.addf %26, %28 : vector<16x128xf32>
    %30 = arith.addf %0, %29 : vector<16x128xf32>
    %c0_15 = arith.constant 0 : index
    %c0_16 = arith.constant 0 : index
    %31 = vector.load %arg6[%c0_15, %c0_16] : memref<16x128xf32, #tpu.memory_space<vmem>>, vector<16x128xf32>
    tpu.vector_store %arg6[%c0_15, %c0_16], %30 {strides = array<i32>} : memref<16x128xf32, #tpu.memory_space<vmem>>, vector<16x128xf32>,
    return
  }
  func.func @transform_0(%arg0: i32) -> (i32, i32) {
    %c0_i32 = arith.constant 0 : i32
    %c0_i32_0 = arith.constant 0 : i32
    return %arg0, %c0_i32 : i32, i32
  }
  func.func @transform_1(%arg0: i32) -> (i32, i32) {
    %c0_i32 = arith.constant 0 : i32
    %c0_i32_0 = arith.constant 0 : i32
    %c0_i32_1 = arith.constant 0 : i32
    return %c0_i32, %c0_i32_0 : i32, i32
  }
  func.func @transform_2(%arg0: i32) -> (i32, i32) {
    %c0_i32 = arith.constant 0 : i32
    %c0_i32_0 = arith.constant 0 : i32
    %c0_i32_1 = arith.constant 0 : i32
    return %c0_i32, %c0_i32_0 : i32, i32
  }
  func.func @transform_3(%arg0: i32) -> (i32, i32) {
    %c0_i32 = arith.constant 0 : i32
    %c0_i32_0 = arith.constant 0 : i32
    %c0_i32_1 = arith.constant 0 : i32
    return %c0_i32, %c0_i32_0 : i32, i32
  }
  func.func @transform_4(%arg0: i32) -> (i32, i32) {
    %c0_i32 = arith.constant 0 : i32
    %c0_i32_0 = arith.constant 0 : i32
    %c0_i32_1 = arith.constant 0 : i32
    return %c0_i32, %c0_i32_0 : i32, i32
  }
  func.func @transform_5(%arg0: i32) -> (i32, i32) {
    %c0_i32 = arith.constant 0 : i32
    %c0_i32_0 = arith.constant 0 : i32
    return %arg0, %c0_i32 : i32, i32
  }
}

</mosaic_0001>

<llo_original>
// kernel: tpu_custom_call.1
$region0: #{tpu_custom_call.1}
  #allocation0 [shape = 'u32[]', space=smem, size = 0x4, offset = 0x4, fixed_abs, tag = 'smem constant byte address 0x4 - core index']
  #allocation1 [shape = 'u32[144,128]{1,0:T(1,128)}', space=vmem, size = 0x12000, scoped, tag = 'internal scratch']
  %s0 = inlined_call_operand.hbm [shape: f32[16,128], index: 0, kind: input, shape index: {}]
  %s1 = inlined_call_operand.vmem [shape: f32[1,128], index: 1, kind: input, shape index: {}]
  %s2 = inlined_call_operand.vmem [shape: f32[1,128], index: 2, kind: input, shape index: {}]
  %s3 = inlined_call_operand.hbm [shape: f32[128,128], index: 3, kind: input, shape index: {}]
  %s4 = inlined_call_operand.vmem [shape: f32[1,128], index: 4, kind: input, shape index: {}]
  %s5 = inlined_call_operand.hbm [shape: f32[16,128], index: 5, kind: output, shape index: {}]
  %s6 = sld [smem:[#allocation0]]
  $region38: #{tpu_custom_call.1} parent=0
    _
  %s8 = ssub.s32 1, %s6
  %s9 = scalar_select 0, %s8, %s6
  $region1: #{tpu_custom_call.1} parent=0
    #allocation2 [shape = 'u8[8192]{0}', space=vmem, size = 0x2000, scoped, tag = 'input window, operand 0, single buffered']
    #allocation3 [shape = 's32[1]{0}', space=sflag, size = 0x4, scoped, tag = 'scoped memory for tpu_custom_call.1']
    #allocation4 [shape = 's32[1]{0}', space=sflag, size = 0x4, scoped, tag = 'scoped memory for tpu_custom_call.1']
    #allocation5 [shape = 'u8[65536]{0}', space=vmem, size = 0x10000, scoped, tag = 'input window, operand 3, single buffered']
    #allocation6 [shape = 's32[1]{0}', space=sflag, size = 0x4, scoped, tag = 'scoped memory for tpu_custom_call.1']
    #allocation7 [shape = 'u8[8192]{0}', space=vmem, size = 0x2000, scoped, tag = 'output window, operand 0, single buffered']
    %10 = vsyncpa [#allocation3], 0
    %11 = vsyncpa [#allocation6], 0
    %12 = vsyncpa [#allocation4], 0
    // Predicated region
    $region2: #{tpu_custom_call.1} parent=1 // pred_check
      _
    $region3: #{tpu_custom_call.1} parent=1 // pred_check_branch
      %14 = sbr.rel (0) target = $region5
    $region4: #{tpu_custom_call.1} parent=1 // pred_region
      %s16 = ssub.s32 256, 256
      %17 = vsyncadd [#allocation3], %s16
      %s18 = sshll.u32 [#allocation2], 4
      %s19 = int_to_ptr.vmem [resolvable:$true] %s18
      %24 = dma.hbm_to_vmem [thread:$0]  %s0, 256, %s19, [#allocation3], 128, 128, 8
    $region5: #{tpu_custom_call.1} parent=1 // pred_fallthru
      _
    // Predicated region
    $region6: #{tpu_custom_call.1} parent=1 // pred_check
      _
    $region7: #{tpu_custom_call.1} parent=1 // pred_check_branch
      %26 = sbr.rel (0) target = $region9
    $region8: #{tpu_custom_call.1} parent=1 // pred_region
      _
    $region9: #{tpu_custom_call.1} parent=1 // pred_fallthru
      _
    // Predicated region
    $region10: #{tpu_custom_call.1} parent=1 // pred_check
      _
    $region11: #{tpu_custom_call.1} parent=1 // pred_check_branch
      %28 = sbr.rel (0) target = $region13
    $region12: #{tpu_custom_call.1} parent=1 // pred_region
      _
    $region13: #{tpu_custom_call.1} parent=1 // pred_fallthru
      _
    // Predicated region
    $region14: #{tpu_custom_call.1} parent=1 // pred_check
      _
    $region15: #{tpu_custom_call.1} parent=1 // pred_check_branch
      %30 = sbr.rel (0) target = $region17
    $region16: #{tpu_custom_call.1} parent=1 // pred_region
      %s32 = ssub.s32 2048, 2048
      %33 = vsyncadd [#allocation6], %s32
      %s34 = sshll.u32 [#allocation5], 4
      %s35 = int_to_ptr.vmem [resolvable:$true] %s34
      %40 = dma.hbm_to_vmem [thread:$0]  %s3, 2048, %s35, [#allocation6], 128, 128, 8
    $region17: #{tpu_custom_call.1} parent=1 // pred_fallthru
      _
    // Predicated region
    $region18: #{tpu_custom_call.1} parent=1 // pred_check
      _
    $region19: #{tpu_custom_call.1} parent=1 // pred_check_branch
      %42 = sbr.rel (0) target = $region21
    $region20: #{tpu_custom_call.1} parent=1 // pred_region
      _
    $region21: #{tpu_custom_call.1} parent=1 // pred_fallthru
      _
    // Predicated region
    $region22: #{tpu_custom_call.1} parent=1 // pred_check
      _
    $region23: #{tpu_custom_call.1} parent=1 // pred_check_branch
      %44 = sbr.rel (0) target = $region25
    $region24: #{tpu_custom_call.1} parent=1 // pred_region
      %45 = dma.done [#allocation3], 256
    $region25: #{tpu_custom_call.1} parent=1 // pred_fallthru
      _
    // Predicated region
    $region26: #{tpu_custom_call.1} parent=1 // pred_check
      _
    $region27: #{tpu_custom_call.1} parent=1 // pred_check_branch
      %47 = sbr.rel (0) target = $region29
    $region28: #{tpu_custom_call.1} parent=1 // pred_region
      %48 = dma.done [#allocation6], 2048
    $region29: #{tpu_custom_call.1} parent=1 // pred_fallthru
      _
    %v49 = vld [vmem:[#allocation2] sm:$0xff]
    %v50 = vld [vmem:[#allocation2 + $0x8] sm:$0xff]
    %v51 = vld [vmem:[%s1] sm:$0x1]
    %v52 = vld [vmem:[%s2] sm:$0x1]
    %53 = vadd.xlane.f32.xlu0 %v49
    %v54 = vpop.xlane.xlu0 %53
    %55 = vadd.xlane.f32.xlu0 %v50
    %v56 = vpop.xlane.xlu0 %55
    %v57 = vrcp.pop 128.0
    %v58 = vmul.f32 %v54, %v57
    %v59 = vmul.f32 %v56, %v57
    %v60 = vsub.f32 %v49, %v58
    %v61 = vsub.f32 %v50, %v59
    %v62 = vmul.f32 %v60, %v60
    %v63 = vmul.f32 %v61, %v61
    %64 = vadd.xlane.f32.xlu0 %v62
    %v65 = vpop.xlane.xlu0 %64
    %66 = vadd.xlane.f32.xlu0 %v63
    %v67 = vpop.xlane.xlu0 %66
    %v68 = vrcp.pop 127.0
    %v69 = vmul.f32 %v65, %v68
    %v70 = vmul.f32 %v67, %v68
    %v71 = vrsqrt.pop %v69
    %v72 = vmul.f32 %v69, %v71
    %vm73 = vcmp.eq.f32.partialorder %v69, inf
    %v74 = vsel %vm73, %v69, %v72
    %vm75 = vcmp.eq.f32.partialorder %v69, 0.0
    %v76 = vand.u32 %v69, 2147483648
    %v77 = vsel %vm75, %v76, %v74
    %v78 = vrsqrt.pop %v70
    %v79 = vmul.f32 %v70, %v78
    %vm80 = vcmp.eq.f32.partialorder %v70, inf
    %v81 = vsel %vm80, %v70, %v79
    %vm82 = vcmp.eq.f32.partialorder %v70, 0.0
    %v83 = vand.u32 %v70, 2147483648
    %v84 = vsel %vm82, %v83, %v81
    %v85 = vadd.f32 %v77, 1e-06
    %v86 = vadd.f32 %v84, 1e-06
    %v87 = vrcp.pop %v85
    %v88 = vmul.f32 1.0, %v87
    %v89 = vrcp.pop %v86
    %v90 = vmul.f32 1.0, %v89
    %v91 = vmul.f32 %v60, %v88
    %v92 = vmul.f32 %v61, %v90
    %v94 = vlaneseq
    %v95 = vshrl.u32 %v94, 7
    %v96 = vsub.s32 0, %v95
    %v97 = vrot.slane %v51, %v96
    %v99 = vmul.f32 %v97, %v91
    %v100 = vmul.f32 %v97, %v92
    %v102 = vlaneseq
    %v103 = vshrl.u32 %v102, 7
    %v104 = vsub.s32 0, %v103
    %v105 = vrot.slane %v52, %v104
    %v107 = vadd.f32 %v99, %v105
    %v108 = vadd.f32 %v100, %v105
    %v109 = vld [vmem:[#allocation5] sm:$0xff]
    %v110 = vld [vmem:[#allocation5 + $0x8] sm:$0xff]
    %v111 = vld [vmem:[#allocation5 + $0x10] sm:$0xff]
    %v112 = vld [vmem:[#allocation5 + $0x18] sm:$0xff]
    %v113 = vld [vmem:[#allocation5 + $0x20] sm:$0xff]
    %v114 = vld [vmem:[#allocation5 + $0x28] sm:$0xff]
    %v115 = vld [vmem:[#allocation5 + $0x30] sm:$0xff]
    %v116 = vld [vmem:[#allocation5 + $0x38] sm:$0xff]
    %v117 = vld [vmem:[#allocation5 + $0x40] sm:$0xff]
    %v118 = vld [vmem:[#allocation5 + $0x48] sm:$0xff]
    %v119 = vld [vmem:[#allocation5 + $0x50] sm:$0xff]
    %v120 = vld [vmem:[#allocation5 + $0x58] sm:$0xff]
    %v121 = vld [vmem:[#allocation5 + $0x60] sm:$0xff]
    %v122 = vld [vmem:[#allocation5 + $0x68] sm:$0xff]
    %v123 = vld [vmem:[#allocation5 + $0x70] sm:$0xff]
    %v124 = vld [vmem:[#allocation5 + $0x78] sm:$0xff]
    %v125 = vld [vmem:[%s4] sm:$0x1]
    %v127 = vlaneseq
    %v128 = vshrl.u32 %v127, 7
    %v129 = vsub.s32 0, %v128
    %v130 = vrot.slane %v125, %v129
    %132 = vmatprep.subr.mxu0 0.0
    %133 = vmatpush1.msra.mxu0 %v124
    %134 = vmatprep.subr.mxu0 0.0
    %135 = vmatpush1.msra.mxu0 %v123
    %136 = vmatprep.subr.mxu0 0.0
    %137 = vmatpush1.msra.mxu0 %v122
    %138 = vmatprep.subr.mxu0 0.0
    %139 = vmatpush1.msra.mxu0 %v121
    %140 = vmatprep.subr.mxu0 0.0
    %141 = vmatpush1.msra.mxu0 %v120
    %142 = vmatprep.subr.mxu0 0.0
    %143 = vmatpush1.msra.mxu0 %v119
    %144 = vmatprep.subr.mxu0 0.0
    %145 = vmatpush1.msra.mxu0 %v118
    %146 = vmatprep.subr.mxu0 0.0
    %147 = vmatpush1.msra.mxu0 %v117
    %148 = vmatprep.subr.mxu0 0.0
    %149 = vmatpush1.msra.mxu0 %v116
    %150 = vmatprep.subr.mxu0 0.0
    %151 = vmatpush1.msra.mxu0 %v115
    %152 = vmatprep.subr.mxu0 0.0
    %153 = vmatpush1.msra.mxu0 %v114
    %154 = vmatprep.subr.mxu0 0.0
    %155 = vmatpush1.msra.mxu0 %v113
    %156 = vmatprep.subr.mxu0 0.0
    %157 = vmatpush1.msra.mxu0 %v112
    %158 = vmatprep.subr.mxu0 0.0
    %159 = vmatpush1.msra.mxu0 %v111
    %160 = vmatprep.subr.mxu0 0.0
    %161 = vmatpush1.msra.mxu0 %v110
    %162 = vmatprep.subr.mxu0 0.0
    %163 = vmatpush1.msra.mxu0 %v109
    %164 = vmatprep.subr.mxu0 0.0
    %165 = vmatpush2.msra.mxu0 0.0
    %166 = vmatprep.subr.mxu0 0.0
    %167 = vmatpush2.msra.mxu0 0.0
    %168 = vmatprep.subr.mxu0 0.0
    %169 = vmatpush2.msra.mxu0 0.0
    %170 = vmatprep.subr.mxu0 0.0
    %171 = vmatpush2.msra.mxu0 0.0
    %172 = vmatprep.subr.mxu0 0.0
    %173 = vmatpush2.msra.mxu0 0.0
    %174 = vmatprep.subr.mxu0 0.0
    %175 = vmatpush2.msra.mxu0 0.0
    %176 = vmatprep.subr.mxu0 0.0
    %177 = vmatpush2.msra.mxu0 0.0
    %178 = vmatprep.subr.mxu0 0.0
    %179 = vmatpush2.msra.mxu0 0.0
    %180 = vmatprep.subr.mxu0 0.0
    %181 = vmatpush2.msra.mxu0 0.0
    %182 = vmatprep.subr.mxu0 0.0
    %183 = vmatpush2.msra.mxu0 0.0
    %184 = vmatprep.subr.mxu0 0.0
    %185 = vmatpush2.msra.mxu0 0.0
    %186 = vmatprep.subr.mxu0 0.0
    %187 = vmatpush2.msra.mxu0 0.0
    %188 = vmatprep.subr.mxu0 0.0
    %189 = vmatpush2.msra.mxu0 0.0
    %190 = vmatprep.subr.mxu0 0.0
    %191 = vmatpush2.msra.mxu0 0.0
    %192 = vmatprep.subr.mxu0 0.0
    %193 = vmatpush2.msra.mxu0 0.0
    %194 = vmatprep.subr.mxu0 0.0
    %195 = vmatpush2.msra.mxu0 0.0
    %196 = vmatprep.mubr.f32.mxu0 0.0
    %197 = vmatmul.mubr.f32.gmra.mxu0 %v107
    %v198 = vpop.f32.mrf.mxu0
    %v199 = vadd.f32 %v130, %v198
    %v200 = vpop.f32.mrf.mxu0
    %201 = vmatprep.mubr.f32.mxu0 0.0
    %202 = vmatmul.mubr.f32.gmra.mxu0 %v108
    %v203 = vpop.f32.mrf.mxu0
    %v204 = vadd.f32 %v130, %v203
    %v205 = vpop.f32.mrf.mxu0
    %206 = vdwg.mxu0
    %v207 = vadd.f32 %v49, %v199
    %v208 = vadd.f32 %v50, %v204
    %209 = vst [vmem:[#allocation7] sm:$0xff] %v207
    %210 = vst [vmem:[#allocation7 + $0x8] sm:$0xff] %v208
    // Predicated region
    $region30: #{tpu_custom_call.1} parent=1 // pred_check
      _
    $region31: #{tpu_custom_call.1} parent=1 // pred_check_branch
      %212 = sbr.rel (0) target = $region33
    $region32: #{tpu_custom_call.1} parent=1 // pred_region
      %s214 = ssub.s32 256, 256
      %215 = vsyncadd [#allocation4], %s214
      %s216 = sshll.u32 [#allocation7], 4
      %s217 = int_to_ptr.vmem [resolvable:$true] %s216
      %222 = dma.vmem_to_hbm [thread:$0]  %s217, 256, %s5, [#allocation4], 128, 128, 8
    $region33: #{tpu_custom_call.1} parent=1 // pred_fallthru
      _
    // Predicated region
    $region34: #{tpu_custom_call.1} parent=1 // pred_check
      _
    $region35: #{tpu_custom_call.1} parent=1 // pred_check_branch
      %224 = sbr.rel (0) target = $region37
    $region36: #{tpu_custom_call.1} parent=1 // pred_region
      %225 = dma.done [#allocation4], 256
    $region37: #{tpu_custom_call.1} parent=1 // pred_fallthru
      _
    %226 = vsyncpa [#allocation3], 1
    %227 = vsyncpa [#allocation6], 1
    %228 = vsyncpa [#allocation4], 1

</llo_original>
